<compile_context>
chip_gen: v5e
topology: v5e:2x2
jax: 0.10.0
libtpu: 0.0.40
codegen_flags: <defaults>
</compile_context>

<pallas_src>
import functools

import jax
import jax.numpy as jnp
from jax.experimental import pallas as pl
from jax.experimental.pallas import tpu as pltpu


def _round_up(x, m):
    return -(-x // m) * m


def _make_mol_tensor_kernel(n_feats, nf_tot, slab_w, mb, tile_atoms, slab_dtype):
    """Build the kernel for a fixed feature layout."""
    pad_lanes = slab_w - nf_tot - 1

    def kernel(*refs):
        # refs layout:
        #   [0]              mol_idx_ref (1, TM)        i32   VMEM (tiled over atoms)
        #   [1 : 1+F]        x_refs      (TM, nf_i)     slab_dtype (tiled over atoms)
        #   [1+F]            w_ref       (slab_w, 1)    f32   packed [w_0|..|w_F-1|b_sum|0]
        #   [2+F]            out_ref     (MB, 1)        f32   (written at last atom step)
        #   [3+F]            slab_ref    (TM, slab_w)   slab_dtype scratch
        #   [4+F]            acc_ref     (MB, slab_w)   f32   scratch accumulator
        mol_idx_ref = refs[0]
        x_refs = refs[1:1 + n_feats]
        w_ref = refs[1 + n_feats]
        out_ref = refs[2 + n_feats]
        slab_ref = refs[3 + n_feats]
        acc_ref = refs[4 + n_feats]

        m = pl.program_id(0)          # molecule block (parallel)
        i = pl.program_id(1)          # atom tile (reduction)

        @pl.when(i == 0)
        def _init():
            acc_ref[...] = jnp.zeros_like(acc_ref)
            # Ones column (per-atom bias hook) + zeroed padding lanes.  Feature
            # lanes [0, nf_tot) are overwritten every step below, so this only
            # needs to run once per molecule block.
            slab_ref[:, nf_tot:nf_tot + 1] = jnp.ones((tile_atoms, 1), slab_dtype)
            if pad_lanes > 0:
                slab_ref[:, nf_tot + 1:] = jnp.zeros((tile_atoms, pad_lanes),
                                                     slab_dtype)

        # Pack this atom tile's features into the slab at fixed lane offsets.
        off = 0
        for x_ref in x_refs:
            nf = x_ref.shape[1]
            slab_ref[:, off:off + nf] = x_ref[...]
            off += nf

        # One-hot segment scatter for this (molecule block, atom tile): a tiny
        # (MB, 1) iota column broadcast-compared against the (1, TM) index row.
        # Padded atoms carry mol index -1 and never match; mol indices outside
        # this block / >= n_molecules are dropped (segment_sum semantics).
        local_ids = jax.lax.broadcasted_iota(jnp.int32, (mb, 1), 0)
        rel = mol_idx_ref[...] - m * mb                               # (1, TM)
        onehot = (local_ids == rel).astype(slab_dtype)                # (MB, TM)

        # Single fused MXU pass: (MB, TM) @ (TM, slab_w), f32 accumulation.
        acc_ref[...] += jnp.dot(onehot, slab_ref[...],
                                preferred_element_type=jnp.float32)

        @pl.when(i == pl.num_programs(1) - 1)
        def _finalize():
            # One N=1 matmul against the packed weight/bias column; the ones
            # column of the slab turned per-molecule atom counts into the lane
            # that multiplies b_sum.
            out_ref[...] = jnp.dot(acc_ref[...], w_ref[...],
                                   preferred_element_type=jnp.float32)

    return kernel


@functools.partial(
    jax.jit,
    static_argnames=("n_molecules", "first_is_interacting", "tile_atoms",
                     "tile_mols", "compute_dtype"))
def mol_tensor_forward(all_features, mol_index, n_molecules, weights, biases,
                       *, first_is_interacting=False, tile_atoms=2048,
                       tile_mols=512, compute_dtype=jnp.bfloat16):
    """Pallas implementation of MolTensor.forward.

    `weights[i]` / `biases[i]` correspond to the i-th Linear layer of the
    module, i.e. to the i-th entry of the feature list AFTER the
    first_is_interacting slice (PyTorch builds its layers for the sliced
    feature_sizes).  mol_index values outside [0, n_molecules) are silently
    dropped, matching segment_sum semantics.
    """
    if first_is_interacting:
        all_features = all_features[1:]
    all_features = list(all_features)
    n_feats = len(all_features)
    assert len(weights) == n_feats and len(biases) == n_feats, (
        "weights/biases must match the post-slice feature list")

    n_atoms = all_features[0].shape[0]
    nf_tot = sum(int(x.shape[1]) for x in all_features)
    slab_w = _round_up(nf_tot + 1, 128)     # features + ones column, lane-padded

    # --- atom tiling (inner "arbitrary" reduction axis) ---
    tm = min(int(tile_atoms), _round_up(n_atoms, 16))
    if tm < n_atoms:
        # Multi-tile: the lane-blocked (1, TM) mol-index row needs 128-aligned tiles.
        tm = _round_up(tm, 128)
    else:
        tm = _round_up(tm, 16)
    n_pad = _round_up(n_atoms, tm)
    pad = n_pad - n_atoms
    x_list = [jnp.pad(x.astype(compute_dtype), ((0, pad), (0, 0)))
              for x in all_features]
    # Padded atoms get mol index -1 so they never contribute to any molecule.
    mol_idx = jnp.pad(mol_index.astype(jnp.int32), (0, pad),
                      constant_values=-1).reshape(1, n_pad)

    # --- molecule blocking (outer "parallel" axis -> feeds both v7x TensorCores) ---
    mb = _round_up(min(int(tile_mols), _round_up(n_molecules, 8)), 8)
    n_mol_pad = _round_up(n_molecules, mb)

    # --- packed weights: [w_0 | w_1 | ... | w_{F-1} | b_sum | zeros] column ---
    w_vec = jnp.concatenate(
        [jnp.asarray(w, jnp.float32).reshape(-1) for w in weights])
    b_sum = jnp.zeros((), jnp.float32)
    for b in biases:
        if b is not None:
            b_sum = b_sum + jnp.asarray(b, jnp.float32).reshape(())
    w_packed = jnp.concatenate([w_vec, b_sum.reshape(1)])
    w_packed = jnp.pad(w_packed, (0, slab_w - (nf_tot + 1))).reshape(slab_w, 1)

    grid = (n_mol_pad // mb, n_pad // tm)

    in_specs = [pl.BlockSpec((1, tm), lambda m, i: (0, i))]                # mol_idx
    in_specs += [pl.BlockSpec((tm, x.shape[1]), lambda m, i: (i, 0))       # features
                 for x in x_list]
    in_specs += [pl.BlockSpec((slab_w, 1), lambda m, i: (0, 0))]           # packed w/b

    scratch_shapes = [
        pltpu.VMEM((tm, slab_w), compute_dtype),    # fused feature slab (+ ones column)
        pltpu.VMEM((mb, slab_w), jnp.float32),      # single resident f32 accumulator
    ]

    kernel = _make_mol_tensor_kernel(n_feats, nf_tot, slab_w, mb, tm, compute_dtype)

    total_mol = pl.pallas_call(
        kernel,
        out_shape=jax.ShapeDtypeStruct((n_mol_pad, 1), jnp.float32),
        grid_spec=pltpu.PrefetchScalarGridSpec(
            num_scalar_prefetch=0,
            grid=grid,
            in_specs=in_specs,
            out_specs=pl.BlockSpec((mb, 1), lambda m, i: (m, 0)),
            scratch_shapes=scratch_shapes),
        compiler_params=pltpu.CompilerParams(
            dimension_semantics=("parallel", "arbitrary"),   # mol blocks x atom reduction
            vmem_limit_bytes=32 * 1024 * 1024),               # ample; safe on v5e/v6e/v7x
    )(mol_idx, *x_list, w_packed)

    total_mol = total_mol[:n_molecules]
    # Lane-dense kernel output; the trivial eye(3) broadcast stays outside.
    identity = jnp.eye(3, dtype=total_mol.dtype)
    return total_mol[:, :, None] * identity[None, :, :]


def reference_forward(all_features, mol_index, n_molecules, weights, biases):
    """Pure-JAX (f32) reference mirroring the PyTorch module."""
    partial = []
    for x, w, b in zip(all_features, weights, biases):
        y = x.astype(jnp.float32) @ jnp.asarray(w, jnp.float32).reshape(-1, 1)
        if b is not None:
            y = y + jnp.asarray(b, jnp.float32)
        partial.append(y)
    total_atom = sum(partial)                                          # (N, 1)
    total_mol = jax.ops.segment_sum(total_atom, mol_index.astype(jnp.int32),
                                    num_segments=n_molecules)          # (n_mol, 1)
    identity = jnp.eye(3, dtype=total_mol.dtype)
    return total_mol[:, :, None] * identity[None, :, :]


def _make_case(key, feature_sizes, n_atoms, n_molecules):
    k_feat, k_idx, k_w = jax.random.split(key, 3)
    feat_keys = jax.random.split(k_feat, len(feature_sizes))
    all_features = [
        jax.random.normal(fk, (n_atoms, nf), dtype=jnp.float32)
        for fk, nf in zip(feat_keys, feature_sizes)
    ]
    mol_index = jax.random.randint(k_idx, (n_atoms,), 0, n_molecules,
                                   dtype=jnp.int32)
    # torch.nn.Linear(nf, 1, bias=...); first_is_interacting=False -> layer 0 no bias.
    w_keys = jax.random.split(k_w, 2 * len(feature_sizes))
    weights, biases = [], []
    for i, nf in enumerate(feature_sizes):
        scale = 1.0 / jnp.sqrt(jnp.float32(nf))
        w = jax.random.normal(w_keys[2 * i], (1, nf), dtype=jnp.float32) * scale
        weights.append(w)
        if i == 0:
            biases.append(None)
        else:
            b = jax.random.normal(w_keys[2 * i + 1], (1,), dtype=jnp.float32) * scale
            biases.append(b)
    return all_features, mol_index, tuple(weights), tuple(biases)


if __name__ == "__main__":
    key = jax.random.PRNGKey(0)
    k1, k2, k3, k4 = jax.random.split(key, 4)

    # Case 1: small single-tile case.  MolTensor(feature_sizes=[32, 16]).
    feats, idx, w, b = _make_case(k1, [32, 16], n_atoms=24, n_molecules=4)
    out = jax.block_until_ready(mol_tensor_forward(feats, idx, 4, w, b))
    ref = reference_forward(feats, idx, 4, w, b)
    assert out.shape == (4, 3, 3)
    # bf16 feature inputs (f32 accumulation) -> loosen tolerance vs f32 reference.
    assert jnp.allclose(out, ref, atol=5e-2, rtol=5e-2), "case 1 mismatch"

    # Case 2: multi-tile atom grid + padding (300 atoms, TM=128 -> 3 tiles), bf16.
    feats2, idx2, w2, b2 = _make_case(k2, [32, 16], n_atoms=300, n_molecules=5)
    out2 = jax.block_until_ready(
        mol_tensor_forward(feats2, idx2, 5, w2, b2, tile_atoms=128))
    ref2 = reference_forward(feats2, idx2, 5, w2, b2)
    assert out2.shape == (5, 3, 3)
    assert jnp.allclose(out2, ref2, atol=5e-2, rtol=5e-2), "case 2 mismatch"

    # Case 3: f32 feature path for accuracy-sensitive callers -> tight tolerance.
    out3 = jax.block_until_ready(
        mol_tensor_forward(feats2, idx2, 5, w2, b2, tile_atoms=128,
                           compute_dtype=jnp.float32))
    assert jnp.allclose(out3, ref2, atol=1e-3, rtol=1e-3), "case 3 mismatch"

    # Case 4: multiple molecule blocks (parallel axis) + TM auto-alignment to 128.
    feats4, idx4, w4, b4 = _make_case(k3, [32, 16], n_atoms=200, n_molecules=20)
    out4 = jax.block_until_ready(
        mol_tensor_forward(feats4, idx4, 20, w4, b4, tile_atoms=64, tile_mols=8,
                           compute_dtype=jnp.float32))
    ref4 = reference_forward(feats4, idx4, 20, w4, b4)
    assert out4.shape == (20, 3, 3)
    assert jnp.allclose(out4, ref4, atol=1e-3, rtol=1e-3), "case 4 mismatch"

    # Case 5: first_is_interacting=True (leading feature tensor is sliced off;
    # weights/biases correspond to the remaining layers, as the module builds them).
    extra = jax.random.normal(k4, (24, 8), dtype=jnp.float32)
    out5 = jax.block_until_ready(
        mol_tensor_forward([extra] + list(feats), idx, 4, w, b,
                           first_is_interacting=True, compute_dtype=jnp.float32))
    ref5 = reference_forward(feats, idx, 4, w, b)
    assert jnp.allclose(out5, ref5, atol=1e-3, rtol=1e-3), "case 5 mismatch"

    print("KERNEL_OK")
</pallas_src>

<mosaic_0001>
module attributes {stable_mosaic.version = 11 : i64} {
  func.func @kernel(%arg0: i32, %arg1: i32, %arg2: memref<1x32xi32, #tpu.memory_space<vmem>>, %arg3: memref<32x32xbf16, #tpu.memory_space<vmem>>, %arg4: memref<32x16xbf16, #tpu.memory_space<vmem>>, %arg5: memref<128x1xf32, #tpu.memory_space<vmem>>, %arg6: memref<8x1xf32, #tpu.memory_space<vmem>>, %arg7: memref<32x128xbf16, #tpu.memory_space<vmem>>, %arg8: memref<8x128xf32, #tpu.memory_space<vmem>>) attributes {dimension_semantics = [#tpu.dimension_semantics<parallel>, #tpu.dimension_semantics<arbitrary>], iteration_bounds = array<i64: 1, 1>, scalar_prefetch = 0 : i64, scratch_operands = 2 : i64, tpu.core_type = #tpu.core_type<tc>, window_params = [{transform_indices = @transform_0, window_bounds = array<i64: 1, 32>}, {transform_indices = @transform_1, window_bounds = array<i64: 32, 32>}, {transform_indices = @transform_2, window_bounds = array<i64: 32, 16>}, {pipeline_mode = #tpu.pipeline_mode<synchronous>, transform_indices = @transform_3, window_bounds = array<i64: 128, 1>}, {transform_indices = @transform_4, window_bounds = array<i64: 8, 1>}]} {
    %c0_i32 = arith.constant 0 : i32
    %0 = arith.cmpi eq, %arg1, %c0_i32 : i32
    %1 = arith.extui %0 : i1 to i32
    %c0_i32_0 = arith.constant 0 : i32
    %2 = arith.cmpi ne, %1, %c0_i32_0 : i32
    scf.if %2 {
      %cst_17 = arith.constant 0.000000e+00 : f32
      %26 = vector.broadcast %cst_17 : f32 to vector<8x128xf32>
      %c0_18 = arith.constant 0 : index
      %c0_19 = arith.constant 0 : index
      %27 = vector.load %arg8[%c0_18, %c0_19] : memref<8x128xf32, #tpu.memory_space<vmem>>, vector<8x128xf32>
      tpu.vector_store %arg8[%c0_18, %c0_19], %26 {strides = array<i32>} : memref<8x128xf32, #tpu.memory_space<vmem>>, vector<8x128xf32>,
      %cst_20 = arith.constant 1.000000e+00 : bf16
      %28 = vector.broadcast %cst_20 : bf16 to vector<32x1xbf16>
      %c0_21 = arith.constant 0 : index
      %c48 = arith.constant 48 : index
      %29 = vector.load %arg7[%c0_21, %c48] : memref<32x128xbf16, #tpu.memory_space<vmem>>, vector<32x1xbf16>
      tpu.vector_store %arg7[%c0_21, %c48], %28 {strides = array<i32>} : memref<32x128xbf16, #tpu.memory_space<vmem>>, vector<32x1xbf16>,
      %cst_22 = arith.constant 0.000000e+00 : bf16
      %30 = vector.broadcast %cst_22 : bf16 to vector<32x79xbf16>
      %c0_23 = arith.constant 0 : index
      %c49 = arith.constant 49 : index
      %31 = vector.load %arg7[%c0_23, %c49] : memref<32x128xbf16, #tpu.memory_space<vmem>>, vector<32x79xbf16>
      tpu.vector_store %arg7[%c0_23, %c49], %30 {strides = array<i32>} : memref<32x128xbf16, #tpu.memory_space<vmem>>, vector<32x79xbf16>,
    } else {
    }
    %c0 = arith.constant 0 : index
    %c0_1 = arith.constant 0 : index
    %3 = vector.load %arg3[%c0, %c0_1] : memref<32x32xbf16, #tpu.memory_space<vmem>>, vector<32x32xbf16>
    %c0_2 = arith.constant 0 : index
    %c0_3 = arith.constant 0 : index
    %4 = vector.load %arg7[%c0_2, %c0_3] : memref<32x128xbf16, #tpu.memory_space<vmem>>, vector<32x32xbf16>
    tpu.vector_store %arg7[%c0_2, %c0_3], %3 {strides = array<i32>} : memref<32x128xbf16, #tpu.memory_space<vmem>>, vector<32x32xbf16>,
    %c0_4 = arith.constant 0 : index
    %c0_5 = arith.constant 0 : index
    %5 = vector.load %arg4[%c0_4, %c0_5] : memref<32x16xbf16, #tpu.memory_space<vmem>>, vector<32x16xbf16>
    %c0_6 = arith.constant 0 : index
    %c32 = arith.constant 32 : index
    %6 = vector.load %arg7[%c0_6, %c32] : memref<32x128xbf16, #tpu.memory_space<vmem>>, vector<32x16xbf16>
    tpu.vector_store %arg7[%c0_6, %c32], %5 {strides = array<i32>} : memref<32x128xbf16, #tpu.memory_space<vmem>>, vector<32x16xbf16>,
    %7 = tpu.iota {dimensions = array<i32: 0>} : vector<8x1xi32>
    %c0_7 = arith.constant 0 : index
    %c0_8 = arith.constant 0 : index
    %8 = vector.load %arg2[%c0_7, %c0_8] : memref<1x32xi32, #tpu.memory_space<vmem>>, vector<1x32xi32>
    %c8_i32 = arith.constant 8 : i32
    %9 = arith.muli %arg0, %c8_i32 : i32
    %10 = vector.broadcast %9 : i32 to vector<1x32xi32>
    %11 = arith.subi %8, %10 : vector<1x32xi32>
    %12 = vector.broadcast %7 : vector<8x1xi32> to vector<8x32xi32>
    %13 = vector.broadcast %11 : vector<1x32xi32> to vector<8x32xi32>
    %14 = arith.cmpi eq, %12, %13 : vector<8x32xi32>
    %15 = arith.extui %14 : vector<8x32xi1> to vector<8x32xi32>
    %16 = arith.sitofp %15 : vector<8x32xi32> to vector<8x32xf32>
    %17 = arith.truncf %16 : vector<8x32xf32> to vector<8x32xbf16>
    %c0_9 = arith.constant 0 : index
    %c0_10 = arith.constant 0 : index
    %18 = vector.load %arg8[%c0_9, %c0_10] : memref<8x128xf32, #tpu.memory_space<vmem>>, vector<8x128xf32>
    %c0_11 = arith.constant 0 : index
    %c0_12 = arith.constant 0 : index
    %19 = vector.load %arg7[%c0_11, %c0_12] : memref<32x128xbf16, #tpu.memory_space<vmem>>, vector<32x128xbf16>
    %cst = arith.constant dense<0.000000e+00> : vector<8x128xf32>
    %20 = tpu.matmul %17, %19, %cst {dimension_numbers = #tpu.dot_dimension_numbers<[1], [0], [0], [1], [0, 0, 1, 1], [], []>} : vector<8x32xbf16>, vector<32x128xbf16>, vector<8x128xf32> -> vector<8x128xf32>
    %21 = arith.addf %18, %20 : vector<8x128xf32>
    %c0_13 = arith.constant 0 : index
    %c0_14 = arith.constant 0 : index
    %22 = vector.load %arg8[%c0_13, %c0_14] : memref<8x128xf32, #tpu.memory_space<vmem>>, vector<8x128xf32>
    tpu.vector_store %arg8[%c0_13, %c0_14], %21 {strides = array<i32>} : memref<8x128xf32, #tpu.memory_space<vmem>>, vector<8x128xf32>,
    %c0_i32_15 = arith.constant 0 : i32
    %23 = arith.cmpi eq, %arg1, %c0_i32_15 : i32
    %24 = arith.extui %23 : i1 to i32
    %c0_i32_16 = arith.constant 0 : i32
    %25 = arith.cmpi ne, %24, %c0_i32_16 : i32
    scf.if %25 {
      %c0_17 = arith.constant 0 : index
      %c0_18 = arith.constant 0 : index
      %26 = vector.load %arg8[%c0_17, %c0_18] : memref<8x128xf32, #tpu.memory_space<vmem>>, vector<8x128xf32>
      %c0_19 = arith.constant 0 : index
      %c0_20 = arith.constant 0 : index
      %27 = vector.load %arg5[%c0_19, %c0_20] : memref<128x1xf32, #tpu.memory_space<vmem>>, vector<128x1xf32>
      %cst_21 = arith.constant dense<0.000000e+00> : vector<8x1xf32>
      %28 = tpu.matmul %26, %27, %cst_21 {dimension_numbers = #tpu.dot_dimension_numbers<[1], [0], [0], [1], [0, 0, 1, 1], [], []>} : vector<8x128xf32>, vector<128x1xf32>, vector<8x1xf32> -> vector<8x1xf32>
      %c0_22 = arith.constant 0 : index
      %c0_23 = arith.constant 0 : index
      %29 = vector.load %arg6[%c0_22, %c0_23] : memref<8x1xf32, #tpu.memory_space<vmem>>, vector<8x1xf32>
      tpu.vector_store %arg6[%c0_22, %c0_23], %28 {strides = array<i32>} : memref<8x1xf32, #tpu.memory_space<vmem>>, vector<8x1xf32>,
    } else {
    }
    return
  }
  func.func @transform_0(%arg0: i32, %arg1: i32) -> (i32, i32) {
    %c0_i32 = arith.constant 0 : i32
    %c0_i32_0 = arith.constant 0 : i32
    return %c0_i32, %arg1 : i32, i32
  }
  func.func @transform_1(%arg0: i32, %arg1: i32) -> (i32, i32) {
    %c0_i32 = arith.constant 0 : i32
    %c0_i32_0 = arith.constant 0 : i32
    return %arg1, %c0_i32 : i32, i32
  }
  func.func @transform_2(%arg0: i32, %arg1: i32) -> (i32, i32) {
    %c0_i32 = arith.constant 0 : i32
    %c0_i32_0 = arith.constant 0 : i32
    return %arg1, %c0_i32 : i32, i32
  }
  func.func @transform_3(%arg0: i32, %arg1: i32) -> (i32, i32) {
    %c0_i32 = arith.constant 0 : i32
    %c0_i32_0 = arith.constant 0 : i32
    %c0_i32_1 = arith.constant 0 : i32
    return %c0_i32, %c0_i32_0 : i32, i32
  }
  func.func @transform_4(%arg0: i32, %arg1: i32) -> (i32, i32) {
    %c0_i32 = arith.constant 0 : i32
    %c0_i32_0 = arith.constant 0 : i32
    return %arg0, %c0_i32 : i32, i32
  }
}

</mosaic_0001>

<llo_original>
// kernel: mol_tensor_forward.1
$region0: #{mol_tensor_forward.1}
  #allocation0 [shape = 'u32[]', space=smem, size = 0x4, offset = 0x4, fixed_abs, tag = 'smem constant byte address 0x4 - core index']
  #allocation1 [shape = 'u32[72,128]{1,0:T(1,128)}', space=vmem, size = 0x9000, scoped, tag = 'internal scratch']
  #allocation2 [shape = 'bf16[32,128]{1,0:T(8,128)(2,1)}', space=vmem, size = 0x2000, scoped, tag = 'scratch operand']
  #allocation3 [shape = 'f32[8,128]{1,0:T(8,128)}', space=vmem, size = 0x1000, scoped, tag = 'scratch operand']
  %s0 = inlined_call_operand.vmem [shape: s32[1,32], index: 0, kind: input, shape index: {}]
  %s1 = inlined_call_operand.vmem [shape: bf16[32,32], index: 1, kind: input, shape index: {}]
  %s2 = inlined_call_operand.vmem [shape: bf16[32,16], index: 2, kind: input, shape index: {}]
  %s3 = inlined_call_operand.vmem [shape: f32[128,1], index: 3, kind: input, shape index: {}]
  %s4 = inlined_call_operand.vmem [shape: f32[8,1], index: 4, kind: output, shape index: {}]
  %s5 = sld [smem:[#allocation0]]
  $region34: #{mol_tensor_forward.1} parent=0
    _
  %s7 = ssub.s32 1, %s5
  %s8 = scalar_select 0, %s7, %s5
  // Predicated region
  $region2: #{mol_tensor_forward.1} parent=0 // pred_check
    _
  $region3: #{mol_tensor_forward.1} parent=0 // pred_check_branch
    %10 = sbr.rel (0) target = $region5
  $region4: #{mol_tensor_forward.1} parent=0 // pred_region
    _
  $region5: #{mol_tensor_forward.1} parent=0 // pred_fallthru
    _
  // Predicated region
  $region6: #{mol_tensor_forward.1} parent=0 // pred_check
    _
  $region7: #{mol_tensor_forward.1} parent=0 // pred_check_branch
    %12 = sbr.rel (0) target = $region9
  $region8: #{mol_tensor_forward.1} parent=0 // pred_region
    _
  $region9: #{mol_tensor_forward.1} parent=0 // pred_fallthru
    _
  // Predicated region
  $region10: #{mol_tensor_forward.1} parent=0 // pred_check
    _
  $region11: #{mol_tensor_forward.1} parent=0 // pred_check_branch
    %14 = sbr.rel (0) target = $region13
  $region12: #{mol_tensor_forward.1} parent=0 // pred_region
    _
  $region13: #{mol_tensor_forward.1} parent=0 // pred_fallthru
    _
  // Predicated region
  $region14: #{mol_tensor_forward.1} parent=0 // pred_check
    _
  $region15: #{mol_tensor_forward.1} parent=0 // pred_check_branch
    %16 = sbr.rel (0) target = $region17
  $region16: #{mol_tensor_forward.1} parent=0 // pred_region
    _
  $region17: #{mol_tensor_forward.1} parent=0 // pred_fallthru
    _
  %p19 = scmp.eq.s32.totalorder 0, 0
  // Predicated region
  $region18: #{mol_tensor_forward.1} parent=0 // pred_check
    %p20 = pneg %p19
  $region19: #{mol_tensor_forward.1} parent=0 // pred_check_branch
    %22 = sbr.rel (%p20) target = $region21
  $region20: #{mol_tensor_forward.1} parent=0 // pred_region
    %23 = vst [vmem:[#allocation3] sm:$0xff] 0.0
    %vm24 = vcmask 396672
    %25 = vst.msk [vmem:[#allocation2] sm:$0xf] %vm24, 1065369472
    %26 = vst.msk [vmem:[#allocation2 + $0x4] sm:$0xf] %vm24, 1065369472
    %27 = vst.msk [vmem:[#allocation2 + $0x8] sm:$0xf] %vm24, 1065369472
    %28 = vst.msk [vmem:[#allocation2 + $0xc] sm:$0xf] %vm24, 1065369472
    %vm29 = vcmask 1043848
    %30 = vst.msk [vmem:[#allocation2] sm:$0xf] %vm29, 0
    %31 = vst.msk [vmem:[#allocation2 + $0x4] sm:$0xf] %vm29, 0
    %32 = vst.msk [vmem:[#allocation2 + $0x8] sm:$0xf] %vm29, 0
    %33 = vst.msk [vmem:[#allocation2 + $0xc] sm:$0xf] %vm29, 0
  $region21: #{mol_tensor_forward.1} parent=0 // pred_fallthru
    _
  %v34 = vld [vmem:[%s1] sm:$0xf]
  %v35 = vld [vmem:[%s1 + $0x4] sm:$0xf]
  %v36 = vld [vmem:[%s1 + $0x8] sm:$0xf]
  %v37 = vld [vmem:[%s1 + $0xc] sm:$0xf]
  %vm38 = vcmask 257024
  %39 = vst.msk [vmem:[#allocation2] sm:$0xf] %vm38, %v34
  %40 = vst.msk [vmem:[#allocation2 + $0x4] sm:$0xf] %vm38, %v35
  %41 = vst.msk [vmem:[#allocation2 + $0x8] sm:$0xf] %vm38, %v36
  %42 = vst.msk [vmem:[#allocation2 + $0xc] sm:$0xf] %vm38, %v37
  %v43 = vld [vmem:[%s2] sm:$0xf]
  %v44 = vld [vmem:[%s2 + $0x4] sm:$0xf]
  %v45 = vld [vmem:[%s2 + $0x8] sm:$0xf]
  %v46 = vld [vmem:[%s2 + $0xc] sm:$0xf]
  %51 = vrot.lane.b32.xlu0 %v43, 32
  %v52 = vpop.permute.xlu0 %51
  %53 = vrot.lane.b32.xlu0 %v44, 32
  %v54 = vpop.permute.xlu0 %53
  %55 = vrot.lane.b32.xlu0 %v45, 32
  %v56 = vpop.permute.xlu0 %55
  %57 = vrot.lane.b32.xlu0 %v46, 32
  %v58 = vpop.permute.xlu0 %57
  %vm63 = vcmask 388352
  %64 = vst.msk [vmem:[#allocation2] sm:$0xf] %vm63, %v52
  %65 = vst.msk [vmem:[#allocation2 + $0x4] sm:$0xf] %vm63, %v54
  %66 = vst.msk [vmem:[#allocation2 + $0x8] sm:$0xf] %vm63, %v56
  %67 = vst.msk [vmem:[#allocation2 + $0xc] sm:$0xf] %vm63, %v58
  %v68 = vlaneseq
  %v69 = vshrl.u32 %v68, 7
  %v70 = vld [vmem:[%s0] sm:$0x1]
  %s71 = smul.u32 0, 8
  %v72 = vstv %s71
  %v73 = vsub.s32 %v70, %v72
  %v74 = vperm.slane %v73, 0
  %vm75 = vcmp.eq.s32.totalorder %v69, %v74
  %v76 = vsel %vm75, 1, 0
  %v77 = vcvt.s32.f32 %v76
  %v78 = vpack.c.bf16 %v77, %v77
  %v79 = vld [vmem:[#allocation3] sm:$0xff]
  %v80 = vld [vmem:[#allocation2] sm:$0xf]
  %v81 = vld [vmem:[#allocation2 + $0x4] sm:$0xf]
  %v82 = vld [vmem:[#allocation2 + $0x8] sm:$0xf]
  %v83 = vld [vmem:[#allocation2 + $0xc] sm:$0xf]
  %v88 = vunpack.c.l.b16 %v80
  %v89 = vunpack.c.l.b16 %v81
  %v90 = vunpack.c.l.b16 %v82
  %v91 = vunpack.c.l.b16 %v83
  %v92 = vpack.c.b16 %v89, %v88
  %v93 = vpack.c.b16 %v91, %v90
  %vm96 = vcmask 261120
  %v98 = vsel %vm96, %v78, 0
  %100 = vmatpush.bf16.msra.mxu0 0
  %101 = vmatpush.bf16.msra.mxu0 0
  %102 = vmatpush.bf16.msra.mxu0 0
  %103 = vmatpush.bf16.msra.mxu0 0
  %104 = vmatpush.bf16.msra.mxu0 0
  %105 = vmatpush.bf16.msra.mxu0 0
  %106 = vmatpush.bf16.msra.mxu0 %v93
  %107 = vmatpush.bf16.msra.mxu0 %v92
  %108 = vmatmul.bf16.gmra.mxu0 %v98
  %v109 = vpop.f32.mrf.mxu0
  %v110 = vadd.f32 0.0, %v109
  %v111 = vpop.f32.mrf.mxu0
  %112 = vdwg.mxu0
  %v113 = vadd.f32 %v79, %v110
  %114 = vst [vmem:[#allocation3] sm:$0xff] %v113
  // Predicated region
  $region22: #{mol_tensor_forward.1} parent=0 // pred_check
    %p115 = pneg %p19
  $region23: #{mol_tensor_forward.1} parent=0 // pred_check_branch
    %117 = sbr.rel (%p115) target = $region25
  $region24: #{mol_tensor_forward.1} parent=0 // pred_region
    %v118 = vld [vmem:[#allocation3] sm:$0xff]
    %v119 = vld [vmem:[%s3] sm:$0xff]
    %v120 = vld [vmem:[%s3 + $0x8] sm:$0xff]
    %v121 = vld [vmem:[%s3 + $0x10] sm:$0xff]
    %v122 = vld [vmem:[%s3 + $0x18] sm:$0xff]
    %v123 = vld [vmem:[%s3 + $0x20] sm:$0xff]
    %v124 = vld [vmem:[%s3 + $0x28] sm:$0xff]
    %v125 = vld [vmem:[%s3 + $0x30] sm:$0xff]
    %v126 = vld [vmem:[%s3 + $0x38] sm:$0xff]
    %v127 = vld [vmem:[%s3 + $0x40] sm:$0xff]
    %v128 = vld [vmem:[%s3 + $0x48] sm:$0xff]
    %v129 = vld [vmem:[%s3 + $0x50] sm:$0xff]
    %v130 = vld [vmem:[%s3 + $0x58] sm:$0xff]
    %v131 = vld [vmem:[%s3 + $0x60] sm:$0xff]
    %v132 = vld [vmem:[%s3 + $0x68] sm:$0xff]
    %v133 = vld [vmem:[%s3 + $0x70] sm:$0xff]
    %v134 = vld [vmem:[%s3 + $0x78] sm:$0xff]
    %135 = vmatpush.msra.mxu0 %v134
    %136 = vmatpush.msra.mxu0 %v133
    %137 = vmatpush.msra.mxu0 %v132
    %138 = vmatpush.msra.mxu0 %v131
    %139 = vmatpush.msra.mxu0 %v130
    %140 = vmatpush.msra.mxu0 %v129
    %141 = vmatpush.msra.mxu0 %v128
    %142 = vmatpush.msra.mxu0 %v127
    %143 = vmatpush.msra.mxu0 %v126
    %144 = vmatpush.msra.mxu0 %v125
    %145 = vmatpush.msra.mxu0 %v124
    %146 = vmatpush.msra.mxu0 %v123
    %147 = vmatpush.msra.mxu0 %v122
    %148 = vmatpush.msra.mxu0 %v121
    %149 = vmatpush.msra.mxu0 %v120
    %150 = vmatpush.msra.mxu0 %v119
    %151 = vmatmul.f32.gmra.mxu0 %v118
    %v152 = vpop.f32.mrf.mxu0
    %v153 = vadd.f32 0.0, %v152
    %154 = vdwg.mxu0
    %vm155 = vcmask 7168
    %156 = vst.msk [vmem:[%s4] sm:$0xff] %vm155, %v153
  $region25: #{mol_tensor_forward.1} parent=0 // pred_fallthru
    _
  // Predicated region
  $region26: #{mol_tensor_forward.1} parent=0 // pred_check
    _
  $region27: #{mol_tensor_forward.1} parent=0 // pred_check_branch
    %158 = sbr.rel (0) target = $region29
  $region28: #{mol_tensor_forward.1} parent=0 // pred_region
    _
  $region29: #{mol_tensor_forward.1} parent=0 // pred_fallthru
    _
  // Predicated region
  $region30: #{mol_tensor_forward.1} parent=0 // pred_check
    _
  $region31: #{mol_tensor_forward.1} parent=0 // pred_check_branch
    %160 = sbr.rel (0) target = $region33
  $region32: #{mol_tensor_forward.1} parent=0 // pred_region
    _
  $region33: #{mol_tensor_forward.1} parent=0 // pred_fallthru
    _

</llo_original>
